<compile_context>
chip_gen: v5e
topology: v5e:2x2
jax: 0.10.0
libtpu: 0.0.40
codegen_flags: <defaults>
</compile_context>

<pallas_src>
import functools

import jax
import jax.numpy as jnp
from jax.experimental import pallas as pl
from jax.experimental.pallas import tpu as pltpu


def _round_up(n, m):
    return ((n + m - 1) // m) * m


def net2_kernel(x_ref, w1_ref, b1_ref, w2_ref, b2_ref, out_ref, *, bf16_act):
    # Cast x tile to bf16 in-kernel (VPU, hidden under the DMA pipeline).
    x = x_ref[...].astype(jnp.bfloat16)
    # fc1: (TM, Kp) @ (Kp, Hp) on the MXU, f32 accumulation.
    h = jnp.dot(x, w1_ref[...], preferred_element_type=jnp.float32)
    if bf16_act:
        # bias-add in f32, tanh in bf16 (v6e/v7x have bf16 EUP; result was
        # going to bf16 for the second matmul anyway).
        h = jnp.tanh((h + b1_ref[...]).astype(jnp.bfloat16))
    else:
        # v5e path: f32 tanh, then cast for the MXU.
        h = jnp.tanh(h + b1_ref[...]).astype(jnp.bfloat16)
    # fc2: (TM, Hp) @ (Hp, Op), f32 accumulation.
    o = jnp.dot(h, w2_ref[...], preferred_element_type=jnp.float32)
    out_ref[...] = (o + b2_ref[...]).astype(out_ref.dtype)  # lane-dense store


def prepare_params(w1_t, b1, w2_t, b2):
    """One-time prep: pad feature dims to multiples of 128, cast weights to bf16.

    w1_t : (input_size, hidden_size)   (fc1.weight transposed)
    b1   : (1, hidden_size)
    w2_t : (hidden_size, output_size)  (fc2.weight transposed)
    b2   : (1, output_size)
    """
    K, H = w1_t.shape
    O = w2_t.shape[1]
    Kp, Hp, Op = _round_up(K, 128), _round_up(H, 128), _round_up(O, 128)
    w1_p = jnp.pad(w1_t, ((0, Kp - K), (0, Hp - H))).astype(jnp.bfloat16)
    w2_p = jnp.pad(w2_t, ((0, Hp - H), (0, Op - O))).astype(jnp.bfloat16)
    b1_p = jnp.pad(b1, ((0, 0), (0, Hp - H))).astype(jnp.float32)
    b2_p = jnp.pad(b2, ((0, 0), (0, Op - O))).astype(jnp.float32)
    return w1_p, b1_p, w2_p, b2_p


@functools.partial(jax.jit, static_argnames=("out_features", "block_m", "bf16_act"))
def net2_forward(x, w1_p, b1_p, w2_p, b2_p, *, out_features, block_m=512,
                 bf16_act=True):
    """Forward pass of Net2 on pre-padded params.

    x            : (B, input_size) float32
    w1_p/b1_p/.. : outputs of prepare_params (already padded / bf16)
    out_features : original (unpadded) output_size
    returns (B, out_features) float32
    """
    B, K = x.shape
    Kp, Hp = w1_p.shape
    Op = w2_p.shape[1]

    # Batch tile: big tiles for HBM-roofline efficiency at large B; for small
    # and medium B aim for >= 2 tiles (v7x megacore) with 16-row alignment
    # (bf16 packs 16 sublanes per vreg tile).
    if B >= 2 * block_m:
        tm = block_m
    else:
        tm = max(16, min(block_m, _round_up(pl.cdiv(B, 2), 16)))
    Bp = _round_up(B, tm)

    # Pad x only when actually needed (K not lane-aligned and/or batch padding).
    if (B != Bp) or (K != Kp):
        x_in = jnp.pad(x, ((0, Bp - B), (0, Kp - K)))
    else:
        x_in = x

    grid = (Bp // tm,)

    cost = pl.CostEstimate(
        flops=2 * Bp * (Kp * Hp + Hp * Op),
        transcendentals=Bp * Hp,
        bytes_accessed=(Bp * Kp * 4 + Kp * Hp * 2 + Hp * Op * 2
                        + Hp * 4 + Op * 4 + Bp * Op * 4),
    )

    kernel = functools.partial(net2_kernel, bf16_act=bf16_act)

    out_padded = pl.pallas_call(
        kernel,
        out_shape=jax.ShapeDtypeStruct((Bp, Op), jnp.float32),
        grid_spec=pl.GridSpec(
            grid=grid,
            in_specs=[
                pl.BlockSpec((tm, Kp), lambda i: (i, 0)),   # x tile (pipelined)
                pl.BlockSpec((Kp, Hp), lambda i: (0, 0)),   # W1 resident
                pl.BlockSpec((1, Hp), lambda i: (0, 0)),    # b1 resident
                pl.BlockSpec((Hp, Op), lambda i: (0, 0)),   # W2 resident
                pl.BlockSpec((1, Op), lambda i: (0, 0)),    # b2 resident
            ],
            out_specs=pl.BlockSpec((tm, Op), lambda i: (i, 0)),
        ),
        compiler_params=pltpu.CompilerParams(
            dimension_semantics=("parallel",),      # batch tiles -> 2 TCs on v7x
            vmem_limit_bytes=32 * 1024 * 1024,      # safe on v7x's 64 MiB VMEM
        ),
        cost_estimate=cost,
    )(x_in, w1_p, b1_p, w2_p, b2_p)

    # Strip batch / output-lane padding (padded rows hold tanh(b1)@W2+b2 junk).
    return out_padded[:B, :out_features]


def init_params(key, input_size, hidden_size, output_size):
    # Deterministic init mimicking nn.Linear default (uniform in +-1/sqrt(fan_in)).
    k1, k2, k3, k4 = jax.random.split(key, 4)
    bound1 = 1.0 / jnp.sqrt(input_size)
    bound2 = 1.0 / jnp.sqrt(hidden_size)
    # Weights stored pre-transposed: (in, out) so the kernel does x @ W.
    w1_t = jax.random.uniform(k1, (input_size, hidden_size), jnp.float32,
                              -bound1, bound1)
    b1 = jax.random.uniform(k2, (1, hidden_size), jnp.float32, -bound1, bound1)
    w2_t = jax.random.uniform(k3, (hidden_size, output_size), jnp.float32,
                              -bound2, bound2)
    b2 = jax.random.uniform(k4, (1, output_size), jnp.float32, -bound2, bound2)
    return w1_t, b1, w2_t, b2


if __name__ == "__main__":
    input_size, hidden_size, output_size = 32, 32, 16
    batch = 8

    key = jax.random.PRNGKey(0)
    kx, kp = jax.random.split(key)
    x = jax.random.normal(kx, (batch, input_size), jnp.float32)
    w1_t, b1, w2_t, b2 = init_params(kp, input_size, hidden_size, output_size)

    # One-time parameter prep (padding + bf16 cast happens here, not per call).
    w1_p, b1_p, w2_p, b2_p = prepare_params(w1_t, b1, w2_t, b2)
    w1_p, b1_p, w2_p, b2_p = jax.block_until_ready((w1_p, b1_p, w2_p, b2_p))

    out = net2_forward(x, w1_p, b1_p, w2_p, b2_p, out_features=output_size)
    jax.block_until_ready(out)

    # Reference check in plain JAX (f32).  bf16 MXU operands + bf16 tanh =>
    # loose tolerance.
    ref = jnp.tanh(x @ w1_t + b1) @ w2_t + b2
    assert out.shape == (batch, output_size)
    assert jnp.allclose(out, ref, atol=2e-2, rtol=2e-2), (
        float(jnp.max(jnp.abs(out - ref))))

    print("KERNEL_OK")
</pallas_src>

<mosaic_0001>
module attributes {stable_mosaic.version = 11 : i64} {
  func.func @net2_kernel(%arg0: i32, %arg1: memref<16x128xf32, #tpu.memory_space<vmem>>, %arg2: memref<128x128xbf16, #tpu.memory_space<vmem>>, %arg3: memref<1x128xf32, #tpu.memory_space<vmem>>, %arg4: memref<128x128xbf16, #tpu.memory_space<vmem>>, %arg5: memref<1x128xf32, #tpu.memory_space<vmem>>, %arg6: memref<16x128xf32, #tpu.memory_space<vmem>>) attributes {dimension_semantics = [#tpu.dimension_semantics<parallel>], iteration_bounds = array<i64: 1>, scalar_prefetch = 0 : i64, scratch_operands = 0 : i64, tpu.core_type = #tpu.core_type<tc>, window_params = [{transform_indices = @transform_0, window_bounds = array<i64: 16, 128>}, {pipeline_mode = #tpu.pipeline_mode<synchronous>, transform_indices = @transform_1, window_bounds = array<i64: 128, 128>}, {pipeline_mode = #tpu.pipeline_mode<synchronous>, transform_indices = @transform_2, window_bounds = array<i64: 1, 128>}, {pipeline_mode = #tpu.pipeline_mode<synchronous>, transform_indices = @transform_3, window_bounds = array<i64: 128, 128>}, {pipeline_mode = #tpu.pipeline_mode<synchronous>, transform_indices = @transform_4, window_bounds = array<i64: 1, 128>}, {transform_indices = @transform_5, window_bounds = array<i64: 16, 128>}]} {
    %c0 = arith.constant 0 : index
    %c0_0 = arith.constant 0 : index
    %0 = vector.load %arg1[%c0, %c0_0] : memref<16x128xf32, #tpu.memory_space<vmem>>, vector<16x128xf32>
    %1 = arith.truncf %0 : vector<16x128xf32> to vector<16x128xbf16>
    %c0_1 = arith.constant 0 : index
    %c0_2 = arith.constant 0 : index
    %2 = vector.load %arg2[%c0_1, %c0_2] : memref<128x128xbf16, #tpu.memory_space<vmem>>, vector<128x128xbf16>
    %cst = arith.constant dense<0.000000e+00> : vector<16x128xf32>
    %3 = tpu.matmul %1, %2, %cst {dimension_numbers = #tpu.dot_dimension_numbers<[1], [0], [0], [1], [0, 0, 1, 1], [], []>} : vector<16x128xbf16>, vector<128x128xbf16>, vector<16x128xf32> -> vector<16x128xf32>
    %c0_3 = arith.constant 0 : index
    %c0_4 = arith.constant 0 : index
    %4 = vector.load %arg3[%c0_3, %c0_4] : memref<1x128xf32, #tpu.memory_space<vmem>>, vector<1x128xf32>
    %5 = vector.broadcast %4 : vector<1x128xf32> to vector<16x128xf32>
    %6 = arith.addf %3, %5 : vector<16x128xf32>
    %7 = arith.truncf %6 : vector<16x128xf32> to vector<16x128xbf16>
    %8 = math.tanh %7 : vector<16x128xbf16>
    %c0_5 = arith.constant 0 : index
    %c0_6 = arith.constant 0 : index
    %9 = vector.load %arg4[%c0_5, %c0_6] : memref<128x128xbf16, #tpu.memory_space<vmem>>, vector<128x128xbf16>
    %cst_7 = arith.constant dense<0.000000e+00> : vector<16x128xf32>
    %10 = tpu.matmul %8, %9, %cst_7 {dimension_numbers = #tpu.dot_dimension_numbers<[1], [0], [0], [1], [0, 0, 1, 1], [], []>} : vector<16x128xbf16>, vector<128x128xbf16>, vector<16x128xf32> -> vector<16x128xf32>
    %c0_8 = arith.constant 0 : index
    %c0_9 = arith.constant 0 : index
    %11 = vector.load %arg5[%c0_8, %c0_9] : memref<1x128xf32, #tpu.memory_space<vmem>>, vector<1x128xf32>
    %12 = vector.broadcast %11 : vector<1x128xf32> to vector<16x128xf32>
    %13 = arith.addf %10, %12 : vector<16x128xf32>
    %c0_10 = arith.constant 0 : index
    %c0_11 = arith.constant 0 : index
    %14 = vector.load %arg6[%c0_10, %c0_11] : memref<16x128xf32, #tpu.memory_space<vmem>>, vector<16x128xf32>
    tpu.vector_store %arg6[%c0_10, %c0_11], %13 {strides = array<i32>} : memref<16x128xf32, #tpu.memory_space<vmem>>, vector<16x128xf32>,
    return
  }
  func.func @transform_0(%arg0: i32) -> (i32, i32) {
    %c0_i32 = arith.constant 0 : i32
    %c0_i32_0 = arith.constant 0 : i32
    return %arg0, %c0_i32 : i32, i32
  }
  func.func @transform_1(%arg0: i32) -> (i32, i32) {
    %c0_i32 = arith.constant 0 : i32
    %c0_i32_0 = arith.constant 0 : i32
    %c0_i32_1 = arith.constant 0 : i32
    return %c0_i32, %c0_i32_0 : i32, i32
  }
  func.func @transform_2(%arg0: i32) -> (i32, i32) {
    %c0_i32 = arith.constant 0 : i32
    %c0_i32_0 = arith.constant 0 : i32
    %c0_i32_1 = arith.constant 0 : i32
    return %c0_i32, %c0_i32_0 : i32, i32
  }
  func.func @transform_3(%arg0: i32) -> (i32, i32) {
    %c0_i32 = arith.constant 0 : i32
    %c0_i32_0 = arith.constant 0 : i32
    %c0_i32_1 = arith.constant 0 : i32
    return %c0_i32, %c0_i32_0 : i32, i32
  }
  func.func @transform_4(%arg0: i32) -> (i32, i32) {
    %c0_i32 = arith.constant 0 : i32
    %c0_i32_0 = arith.constant 0 : i32
    %c0_i32_1 = arith.constant 0 : i32
    return %c0_i32, %c0_i32_0 : i32, i32
  }
  func.func @transform_5(%arg0: i32) -> (i32, i32) {
    %c0_i32 = arith.constant 0 : i32
    %c0_i32_0 = arith.constant 0 : i32
    return %arg0, %c0_i32 : i32, i32
  }
}

</mosaic_0001>

<llo_original>
// kernel: net2_forward.1
$region0: #{net2_forward.1}
  #allocation0 [shape = 'u32[]', space=smem, size = 0x4, offset = 0x4, fixed_abs, tag = 'smem constant byte address 0x4 - core index']
  #allocation1 [shape = 'u32[72,128]{1,0:T(1,128)}', space=vmem, size = 0x9000, scoped, tag = 'internal scratch']
  %s0 = inlined_call_operand.vmem [shape: f32[16,128], index: 0, kind: input, shape index: {}]
  %s1 = inlined_call_operand.hbm [shape: bf16[128,128], index: 1, kind: input, shape index: {}]
  %s2 = inlined_call_operand.vmem [shape: f32[1,128], index: 2, kind: input, shape index: {}]
  %s3 = inlined_call_operand.hbm [shape: bf16[128,128], index: 3, kind: input, shape index: {}]
  %s4 = inlined_call_operand.vmem [shape: f32[1,128], index: 4, kind: input, shape index: {}]
  %s5 = inlined_call_operand.vmem [shape: f32[16,128], index: 5, kind: output, shape index: {}]
  %s6 = sld [smem:[#allocation0]]
  $region38: #{net2_forward.1} parent=0
    _
  %s8 = ssub.s32 1, %s6
  %s9 = scalar_select 0, %s8, %s6
  $region1: #{net2_forward.1} parent=0
    #allocation2 [shape = 'u8[32768]{0}', space=vmem, size = 0x8000, scoped, tag = 'input window, operand 1, single buffered']
    #allocation3 [shape = 's32[1]{0}', space=sflag, size = 0x4, scoped, tag = 'scoped memory for net2_forward.1']
    #allocation4 [shape = 'u8[32768]{0}', space=vmem, size = 0x8000, scoped, tag = 'input window, operand 3, single buffered']
    #allocation5 [shape = 's32[1]{0}', space=sflag, size = 0x4, scoped, tag = 'scoped memory for net2_forward.1']
    %10 = vsyncpa [#allocation3], 0
    %11 = vsyncpa [#allocation5], 0
    // Predicated region
    $region2: #{net2_forward.1} parent=1 // pred_check
      _
    $region3: #{net2_forward.1} parent=1 // pred_check_branch
      %13 = sbr.rel (0) target = $region5
    $region4: #{net2_forward.1} parent=1 // pred_region
      _
    $region5: #{net2_forward.1} parent=1 // pred_fallthru
      _
    // Predicated region
    $region6: #{net2_forward.1} parent=1 // pred_check
      _
    $region7: #{net2_forward.1} parent=1 // pred_check_branch
      %15 = sbr.rel (0) target = $region9
    $region8: #{net2_forward.1} parent=1 // pred_region
      %17 = vsyncadd [#allocation3], 0
      %s18 = sshll.u32 %s1, 4
      %s19 = int_to_ptr.hbm [resolvable:$true] %s18
      %s20 = sshll.u32 [#allocation2], 4
      %s21 = int_to_ptr.vmem [resolvable:$true] %s20
      %26 = dma.hbm_to_vmem [thread:$0]  %s19, 1024, %s21, [#allocation3], 64, 64, 4
    $region9: #{net2_forward.1} parent=1 // pred_fallthru
      _
    // Predicated region
    $region10: #{net2_forward.1} parent=1 // pred_check
      _
    $region11: #{net2_forward.1} parent=1 // pred_check_branch
      %28 = sbr.rel (0) target = $region13
    $region12: #{net2_forward.1} parent=1 // pred_region
      _
    $region13: #{net2_forward.1} parent=1 // pred_fallthru
      _
    // Predicated region
    $region14: #{net2_forward.1} parent=1 // pred_check
      _
    $region15: #{net2_forward.1} parent=1 // pred_check_branch
      %30 = sbr.rel (0) target = $region17
    $region16: #{net2_forward.1} parent=1 // pred_region
      %32 = vsyncadd [#allocation5], 0
      %s33 = sshll.u32 %s3, 4
      %s34 = int_to_ptr.hbm [resolvable:$true] %s33
      %s35 = sshll.u32 [#allocation4], 4
      %s36 = int_to_ptr.vmem [resolvable:$true] %s35
      %41 = dma.hbm_to_vmem [thread:$0]  %s34, 1024, %s36, [#allocation5], 64, 64, 4
    $region17: #{net2_forward.1} parent=1 // pred_fallthru
      _
    // Predicated region
    $region18: #{net2_forward.1} parent=1 // pred_check
      _
    $region19: #{net2_forward.1} parent=1 // pred_check_branch
      %43 = sbr.rel (0) target = $region21
    $region20: #{net2_forward.1} parent=1 // pred_region
      _
    $region21: #{net2_forward.1} parent=1 // pred_fallthru
      _
    // Predicated region
    $region22: #{net2_forward.1} parent=1 // pred_check
      _
    $region23: #{net2_forward.1} parent=1 // pred_check_branch
      %45 = sbr.rel (0) target = $region25
    $region24: #{net2_forward.1} parent=1 // pred_region
      %47 = dma.done [#allocation3], 1024
    $region25: #{net2_forward.1} parent=1 // pred_fallthru
      _
    // Predicated region
    $region26: #{net2_forward.1} parent=1 // pred_check
      _
    $region27: #{net2_forward.1} parent=1 // pred_check_branch
      %49 = sbr.rel (0) target = $region29
    $region28: #{net2_forward.1} parent=1 // pred_region
      %51 = dma.done [#allocation5], 1024
    $region29: #{net2_forward.1} parent=1 // pred_fallthru
      _
    %v52 = vld [vmem:[%s0] sm:$0xff]
    %v53 = vld [vmem:[%s0 + $0x8] sm:$0xff]
    %v54 = vpack.c.bf16 %v53, %v52
    %v55 = vld [vmem:[#allocation2] sm:$0xf]
    %v56 = vld [vmem:[#allocation2 + $0x4] sm:$0xf]
    %v57 = vld [vmem:[#allocation2 + $0x8] sm:$0xf]
    %v58 = vld [vmem:[#allocation2 + $0xc] sm:$0xf]
    %v59 = vld [vmem:[#allocation2 + $0x10] sm:$0xf]
    %v60 = vld [vmem:[#allocation2 + $0x14] sm:$0xf]
    %v61 = vld [vmem:[#allocation2 + $0x18] sm:$0xf]
    %v62 = vld [vmem:[#allocation2 + $0x1c] sm:$0xf]
    %v63 = vld [vmem:[#allocation2 + $0x20] sm:$0xf]
    %v64 = vld [vmem:[#allocation2 + $0x24] sm:$0xf]
    %v65 = vld [vmem:[#allocation2 + $0x28] sm:$0xf]
    %v66 = vld [vmem:[#allocation2 + $0x2c] sm:$0xf]
    %v67 = vld [vmem:[#allocation2 + $0x30] sm:$0xf]
    %v68 = vld [vmem:[#allocation2 + $0x34] sm:$0xf]
    %v69 = vld [vmem:[#allocation2 + $0x38] sm:$0xf]
    %v70 = vld [vmem:[#allocation2 + $0x3c] sm:$0xf]
    %v71 = vld [vmem:[%s2] sm:$0x1]
    %v73 = vperm.slane %v71, 0
    %v91 = vunpack.c.l.b16 %v55
    %v92 = vunpack.c.l.b16 %v56
    %v93 = vunpack.c.l.b16 %v57
    %v94 = vunpack.c.l.b16 %v58
    %v95 = vunpack.c.l.b16 %v59
    %v96 = vunpack.c.l.b16 %v60
    %v97 = vunpack.c.l.b16 %v61
    %v98 = vunpack.c.l.b16 %v62
    %v99 = vunpack.c.l.b16 %v63
    %v100 = vunpack.c.l.b16 %v64
    %v101 = vunpack.c.l.b16 %v65
    %v102 = vunpack.c.l.b16 %v66
    %v103 = vunpack.c.l.b16 %v67
    %v104 = vunpack.c.l.b16 %v68
    %v105 = vunpack.c.l.b16 %v69
    %v106 = vunpack.c.l.b16 %v70
    %v107 = vpack.c.b16 %v92, %v91
    %v108 = vpack.c.b16 %v94, %v93
    %v109 = vpack.c.b16 %v96, %v95
    %v110 = vpack.c.b16 %v98, %v97
    %v111 = vpack.c.b16 %v100, %v99
    %v112 = vpack.c.b16 %v102, %v101
    %v113 = vpack.c.b16 %v104, %v103
    %v114 = vpack.c.b16 %v106, %v105
    %123 = vmatpush.bf16.msra.mxu0 %v114
    %124 = vmatpush.bf16.msra.mxu0 %v113
    %125 = vmatpush.bf16.msra.mxu0 %v112
    %126 = vmatpush.bf16.msra.mxu0 %v111
    %127 = vmatpush.bf16.msra.mxu0 %v110
    %128 = vmatpush.bf16.msra.mxu0 %v109
    %129 = vmatpush.bf16.msra.mxu0 %v108
    %130 = vmatpush.bf16.msra.mxu0 %v107
    %131 = vmatmul.bf16.gmra.mxu0 %v54
    %v132 = vpop.f32.mrf.mxu0
    %v133 = vadd.f32 %v73, %v132
    %v134 = vpop.f32.mrf.mxu0
    %v135 = vadd.f32 %v73, %v134
    %136 = vdwg.mxu0
    %v137 = vpack.c.bf16 %v135, %v133
    %v138 = vunpack.c.l.bf16 %v137
    %v139 = vunpack.c.h.bf16 %v137
    %v140 = vtanh.pop %v138
    %v141 = vtanh.pop %v139
    %v142 = vpack.c.bf16 %v141, %v140
    %v143 = vld [vmem:[#allocation4] sm:$0xf]
    %v144 = vld [vmem:[#allocation4 + $0x4] sm:$0xf]
    %v145 = vld [vmem:[#allocation4 + $0x8] sm:$0xf]
    %v146 = vld [vmem:[#allocation4 + $0xc] sm:$0xf]
    %v147 = vld [vmem:[#allocation4 + $0x10] sm:$0xf]
    %v148 = vld [vmem:[#allocation4 + $0x14] sm:$0xf]
    %v149 = vld [vmem:[#allocation4 + $0x18] sm:$0xf]
    %v150 = vld [vmem:[#allocation4 + $0x1c] sm:$0xf]
    %v151 = vld [vmem:[#allocation4 + $0x20] sm:$0xf]
    %v152 = vld [vmem:[#allocation4 + $0x24] sm:$0xf]
    %v153 = vld [vmem:[#allocation4 + $0x28] sm:$0xf]
    %v154 = vld [vmem:[#allocation4 + $0x2c] sm:$0xf]
    %v155 = vld [vmem:[#allocation4 + $0x30] sm:$0xf]
    %v156 = vld [vmem:[#allocation4 + $0x34] sm:$0xf]
    %v157 = vld [vmem:[#allocation4 + $0x38] sm:$0xf]
    %v158 = vld [vmem:[#allocation4 + $0x3c] sm:$0xf]
    %v159 = vld [vmem:[%s4] sm:$0x1]
    %v161 = vperm.slane %v159, 0
    %v179 = vunpack.c.l.b16 %v143
    %v180 = vunpack.c.l.b16 %v144
    %v181 = vunpack.c.l.b16 %v145
    %v182 = vunpack.c.l.b16 %v146
    %v183 = vunpack.c.l.b16 %v147
    %v184 = vunpack.c.l.b16 %v148
    %v185 = vunpack.c.l.b16 %v149
    %v186 = vunpack.c.l.b16 %v150
    %v187 = vunpack.c.l.b16 %v151
    %v188 = vunpack.c.l.b16 %v152
    %v189 = vunpack.c.l.b16 %v153
    %v190 = vunpack.c.l.b16 %v154
    %v191 = vunpack.c.l.b16 %v155
    %v192 = vunpack.c.l.b16 %v156
    %v193 = vunpack.c.l.b16 %v157
    %v194 = vunpack.c.l.b16 %v158
    %v195 = vpack.c.b16 %v180, %v179
    %v196 = vpack.c.b16 %v182, %v181
    %v197 = vpack.c.b16 %v184, %v183
    %v198 = vpack.c.b16 %v186, %v185
    %v199 = vpack.c.b16 %v188, %v187
    %v200 = vpack.c.b16 %v190, %v189
    %v201 = vpack.c.b16 %v192, %v191
    %v202 = vpack.c.b16 %v194, %v193
    %211 = vmatpush.bf16.msra.mxu0 %v202
    %212 = vmatpush.bf16.msra.mxu0 %v201
    %213 = vmatpush.bf16.msra.mxu0 %v200
    %214 = vmatpush.bf16.msra.mxu0 %v199
    %215 = vmatpush.bf16.msra.mxu0 %v198
    %216 = vmatpush.bf16.msra.mxu0 %v197
    %217 = vmatpush.bf16.msra.mxu0 %v196
    %218 = vmatpush.bf16.msra.mxu0 %v195
    %219 = vmatmul.bf16.gmra.mxu0 %v142
    %v220 = vpop.f32.mrf.mxu0
    %v221 = vadd.f32 %v161, %v220
    %v222 = vpop.f32.mrf.mxu0
    %v223 = vadd.f32 %v161, %v222
    %224 = vdwg.mxu0
    %225 = vst [vmem:[%s5] sm:$0xff] %v221
    %226 = vst [vmem:[%s5 + $0x8] sm:$0xff] %v223
    // Predicated region
    $region30: #{net2_forward.1} parent=1 // pred_check
      _
    $region31: #{net2_forward.1} parent=1 // pred_check_branch
      %228 = sbr.rel (0) target = $region33
    $region32: #{net2_forward.1} parent=1 // pred_region
      _
    $region33: #{net2_forward.1} parent=1 // pred_fallthru
      _
    // Predicated region
    $region34: #{net2_forward.1} parent=1 // pred_check
      _
    $region35: #{net2_forward.1} parent=1 // pred_check_branch
      %230 = sbr.rel (0) target = $region37
    $region36: #{net2_forward.1} parent=1 // pred_region
      _
    $region37: #{net2_forward.1} parent=1 // pred_fallthru
      _
    %231 = vsyncpa [#allocation3], 1
    %232 = vsyncpa [#allocation5], 1

</llo_original>
